<compile_context>
chip_gen: v5e
topology: v5e:2x2
jax: 0.10.0
libtpu: 0.0.40
codegen_flags: <defaults>
</compile_context>

<pallas_src>
import math

import jax
import jax.numpy as jnp
from jax import lax
from jax.experimental import pallas as pl
from jax.experimental.pallas import tpu as pltpu

B, S, H, FF, VOCAB = 2, 8, 32, 128, 64
NUM_NUMERICAL = 1  # num_numerical_features


def _layernorm(x, g, b, eps=1e-5):
    mu = jnp.mean(x, axis=-1, keepdims=True)
    var = jnp.mean((x - mu) ** 2, axis=-1, keepdims=True)
    return (x - mu) * lax.rsqrt(var + eps) * g + b


def _gelu(x):
    c = math.sqrt(2.0 / math.pi)
    return 0.5 * x * (1.0 + jnp.tanh(c * (x + 0.044715 * x * x * x)))


def nvd_kernel(x_ref, bias_ref, cvss_ref,
               wqkv_ref, wo_ref,
               ln1_g_ref, ln1_b_ref, ln2_g_ref, ln2_b_ref,
               w1_ref, b1_ref, w2_ref, b2_ref,
               lin_wh_ref, lin_wc_ref, lin_b_ref,
               hidden_ref, out_ref):
    x = x_ref[...]                                          # (B*S, H) f32

    # ---- single-head causal self-attention (pre-LN), fused QKV ----
    h = _layernorm(x, ln1_g_ref[...], ln1_b_ref[...])
    qkv = jnp.dot(h.astype(jnp.bfloat16), wqkv_ref[...],
                  preferred_element_type=jnp.float32)       # (B*S, 3H)
    q = qkv[:, :H].reshape(B, S, H)       # 1/sqrt(H) already folded into wq
    k = qkv[:, H:2 * H].reshape(B, S, H)
    v = qkv[:, 2 * H:].reshape(B, S, H)

    s = jnp.einsum("bqd,bkd->bqk",
                   q.astype(jnp.bfloat16), k.astype(jnp.bfloat16),
                   preferred_element_type=jnp.float32)      # (B, S, S)
    s = s + bias_ref[...]                                   # causal + pad additive bias
    m = jnp.max(s, axis=-1, keepdims=True)
    e = jnp.exp(s - m)
    inv = pl.reciprocal(jnp.sum(e, axis=-1, keepdims=True), approx=True)
    probs = e * inv                                         # (B, S, S) f32
    ctx = jnp.einsum("bqk,bkd->bqd",
                     probs.astype(jnp.bfloat16), v.astype(jnp.bfloat16),
                     preferred_element_type=jnp.float32)    # (B, S, H)
    x1 = x + jnp.dot(ctx.reshape(B * S, H).astype(jnp.bfloat16), wo_ref[...],
                     preferred_element_type=jnp.float32)

    # ---- MLP ----
    h2 = _layernorm(x1, ln2_g_ref[...], ln2_b_ref[...])
    ff = _gelu(jnp.dot(h2.astype(jnp.bfloat16), w1_ref[...],
                       preferred_element_type=jnp.float32) + b1_ref[...])
    x2 = x1 + jnp.dot(ff.astype(jnp.bfloat16), w2_ref[...],
                      preferred_element_type=jnp.float32) + b2_ref[...]
    hidden_ref[...] = x2                                    # last_hidden_state

    # ---- regression head:  concat(h_last, cvss) @ W + b ----
    # dot(concat(h_last, cvss), W) == dot(h_last, W[:H]) + cvss * W[H]  (same math)
    for b in range(B):                                      # B=2: unrolled at trace time
        h_last = x2[b * S + S - 1: b * S + S, :]            # (1, H) last valid token row
        dotv = jnp.sum(h_last * lin_wh_ref[...], axis=-1, keepdims=True)   # (1, 1)
        out_ref[b:b + 1, :] = (dotv
                               + cvss_ref[b] * lin_wc_ref[0]
                               + lin_b_ref[0])


def init_params(key):
    ks = jax.random.split(key, 12)
    sc = 0.02
    p = {
        "emb":   sc * jax.random.normal(ks[0], (VOCAB, H), jnp.float32),
        "pos":   sc * jax.random.normal(ks[1], (S, H), jnp.float32),
        "wq":    sc * jax.random.normal(ks[2], (H, H), jnp.float32),
        "wk":    sc * jax.random.normal(ks[3], (H, H), jnp.float32),
        "wv":    sc * jax.random.normal(ks[4], (H, H), jnp.float32),
        "wo":    sc * jax.random.normal(ks[5], (H, H), jnp.float32),
        "ln1_g": jnp.ones((1, H), jnp.float32),
        "ln1_b": jnp.zeros((1, H), jnp.float32),
        "ln2_g": jnp.ones((1, H), jnp.float32),
        "ln2_b": jnp.zeros((1, H), jnp.float32),
        "w1":    sc * jax.random.normal(ks[6], (H, FF), jnp.float32),
        "b1":    jnp.zeros((1, FF), jnp.float32),
        "w2":    sc * jax.random.normal(ks[7], (FF, H), jnp.float32),
        "b2":    jnp.zeros((1, H), jnp.float32),
    }
    # nn.Linear(H + num_numerical_features, 1): weight (1, H+1), bias (1,)
    lin_w = sc * jax.random.normal(ks[8], (1, H + NUM_NUMERICAL), jnp.float32)
    p["lin_wh"] = lin_w[:, :H]                         # (1, H)
    p["lin_wc"] = lin_w[:, H:]                         # (1, 1)
    p["lin_b"] = sc * jax.random.normal(ks[9], (1, 1), jnp.float32)
    return p


def nvd_forward(params, input_ids, attention_mask, cvss_scores):
    # Glue: embedding + positional lookup (gather stays in plain JAX).
    emb = params["emb"][input_ids] + params["pos"][None, :, :]        # (B, S, H) f32
    x = emb.reshape(B * S, H)

    # Precomputed additive attention bias: 0 where (causal & key valid), -1e9 otherwise.
    mask = attention_mask.astype(jnp.float32)                         # (B, S)
    row = jnp.arange(S)[:, None]
    col = jnp.arange(S)[None, :]
    valid = (col <= row)[None, :, :] & (mask[:, None, :] > 0.0)       # (B, S, S)
    bias = jnp.where(valid, 0.0, -1e9).astype(jnp.float32)

    # Fused QKV weight with 1/sqrt(H) folded into the Q block; MXU weights in bf16.
    wqkv = jnp.concatenate(
        [params["wq"] * (1.0 / math.sqrt(H)), params["wk"], params["wv"]],
        axis=1).astype(jnp.bfloat16)                                  # (H, 3H)
    wo = params["wo"].astype(jnp.bfloat16)
    w1 = params["w1"].astype(jnp.bfloat16)
    w2 = params["w2"].astype(jnp.bfloat16)

    # Scalar-shaped tensors go to SMEM.
    cvss = cvss_scores.astype(jnp.float32).reshape(B)                 # (B,)
    lin_wc = params["lin_wc"].reshape(1)                              # (1,)
    lin_b = params["lin_b"].reshape(1)                                # (1,)

    vmem = pl.BlockSpec(memory_space=pltpu.MemorySpace.VMEM)
    smem = pl.BlockSpec(memory_space=pltpu.MemorySpace.SMEM)

    hidden_flat, out = pl.pallas_call(
        nvd_kernel,
        in_specs=[vmem, vmem, smem,            # x, bias, cvss
                  vmem, vmem,                  # wqkv, wo
                  vmem, vmem, vmem, vmem,      # ln1_g, ln1_b, ln2_g, ln2_b
                  vmem, vmem, vmem, vmem,      # w1, b1, w2, b2
                  vmem, smem, smem],           # lin_wh, lin_wc, lin_b
        out_specs=(vmem, vmem),
        out_shape=(jax.ShapeDtypeStruct((B * S, H), jnp.float32),     # last_hidden_state
                   jax.ShapeDtypeStruct((B, 1), jnp.float32)),        # regression output
        cost_estimate=pl.CostEstimate(flops=420_000, transcendentals=2_300,
                                      bytes_accessed=31_000),
    )(x, bias, cvss, wqkv, wo,
      params["ln1_g"], params["ln1_b"], params["ln2_g"], params["ln2_b"],
      w1, params["b1"], w2, params["b2"],
      params["lin_wh"], lin_wc, lin_b)

    # Module's forward returns output.squeeze() -> (B,); hidden kept for verification.
    return out[:, 0], hidden_flat.reshape(B, S, H)


def nvd_reference(params, input_ids, attention_mask, cvss_scores):
    emb = params["emb"][input_ids] + params["pos"][None, :, :]
    mask = attention_mask.astype(jnp.float32)
    outs, hiddens = [], []
    for b in range(B):
        x = emb[b]
        h = _layernorm(x, params["ln1_g"], params["ln1_b"])
        q, k, v = h @ params["wq"], h @ params["wk"], h @ params["wv"]
        sc = (q @ k.T) / math.sqrt(H)
        row = jnp.arange(S)[:, None]
        col = jnp.arange(S)[None, :]
        valid = (col <= row) & (mask[b][None, :] > 0.0)
        sc = jnp.where(valid, sc, -1e9)
        p = jax.nn.softmax(sc, axis=-1)
        x1 = x + (p @ v) @ params["wo"]
        h2 = _layernorm(x1, params["ln2_g"], params["ln2_b"])
        ff = _gelu(h2 @ params["w1"] + params["b1"])
        x2 = x1 + ff @ params["w2"] + params["b2"]
        hiddens.append(x2)
        combined = jnp.concatenate(
            [x2[S - 1], cvss_scores[b:b + 1].astype(jnp.float32)])
        w_full = jnp.concatenate([params["lin_wh"][0], params["lin_wc"][0]])
        outs.append(jnp.dot(combined, w_full) + params["lin_b"][0, 0])
    return jnp.stack(outs), jnp.stack(hiddens)


if __name__ == "__main__":
    key = jax.random.PRNGKey(0)
    k_par, k_ids, k_cvss = jax.random.split(key, 3)

    params = init_params(k_par)
    input_ids = jax.random.randint(k_ids, (B, S), 0, VOCAB, dtype=jnp.int32)
    attention_mask = jnp.array(
        [[1] * S, [1] * (S - 2) + [0, 0]], dtype=jnp.int32)      # (B, S)
    cvss_scores = 10.0 * jax.random.uniform(k_cvss, (B,), jnp.float32)

    fwd = jax.jit(nvd_forward)
    out, hidden = fwd(params, input_ids, attention_mask, cvss_scores)
    jax.block_until_ready(out)

    ref_out, ref_hidden = nvd_reference(params, input_ids, attention_mask, cvss_scores)
    assert out.shape == (B,)
    assert hidden.shape == (B, S, H)
    assert jnp.allclose(out, ref_out, rtol=1e-2, atol=1e-2)
    assert jnp.allclose(hidden, ref_hidden, rtol=1e-2, atol=1e-2)

    print("KERNEL_OK")
</pallas_src>

<mosaic_0001>
module attributes {stable_mosaic.version = 11 : i64} {
  func.func @nvd_kernel(%arg0: memref<16x32xf32, #tpu.memory_space<vmem>>, %arg1: memref<2x8x8xf32, #tpu.memory_space<vmem>>, %arg2: memref<2xf32, #tpu.memory_space<smem>>, %arg3: memref<32x96xbf16, #tpu.memory_space<vmem>>, %arg4: memref<32x32xbf16, #tpu.memory_space<vmem>>, %arg5: memref<1x32xf32, #tpu.memory_space<vmem>>, %arg6: memref<1x32xf32, #tpu.memory_space<vmem>>, %arg7: memref<1x32xf32, #tpu.memory_space<vmem>>, %arg8: memref<1x32xf32, #tpu.memory_space<vmem>>, %arg9: memref<32x128xbf16, #tpu.memory_space<vmem>>, %arg10: memref<1x128xf32, #tpu.memory_space<vmem>>, %arg11: memref<128x32xbf16, #tpu.memory_space<vmem>>, %arg12: memref<1x32xf32, #tpu.memory_space<vmem>>, %arg13: memref<1x32xf32, #tpu.memory_space<vmem>>, %arg14: memref<1xf32, #tpu.memory_space<smem>>, %arg15: memref<1xf32, #tpu.memory_space<smem>>, %arg16: memref<16x32xf32, #tpu.memory_space<vmem>>, %arg17: memref<2x1xf32, #tpu.memory_space<vmem>>) attributes {dimension_semantics = [], scalar_prefetch = 0 : i64, scratch_operands = 0 : i64, tpu.core_type = #tpu.core_type<tc>} {
    %c0 = arith.constant 0 : index
    %c0_0 = arith.constant 0 : index
    %0 = vector.load %arg0[%c0, %c0_0] : memref<16x32xf32, #tpu.memory_space<vmem>>, vector<16x32xf32>
    %c0_1 = arith.constant 0 : index
    %c0_2 = arith.constant 0 : index
    %1 = vector.load %arg5[%c0_1, %c0_2] : memref<1x32xf32, #tpu.memory_space<vmem>>, vector<1x32xf32>
    %c0_3 = arith.constant 0 : index
    %c0_4 = arith.constant 0 : index
    %2 = vector.load %arg6[%c0_3, %c0_4] : memref<1x32xf32, #tpu.memory_space<vmem>>, vector<1x32xf32>
    %cst = arith.constant dense<0.000000e+00> : vector<16xf32>
    %3 = vector.multi_reduction <add>, %0, %cst [1] : vector<16x32xf32> to vector<16xf32>
    %4 = vector.shape_cast %3 : vector<16xf32> to vector<16x1xf32>
    %cst_5 = arith.constant 3.200000e+01 : f32
    %5 = vector.broadcast %cst_5 : f32 to vector<16x1xf32>
    %6 = arith.divf %4, %5 : vector<16x1xf32>
    %7 = vector.broadcast %6 : vector<16x1xf32> to vector<16x32xf32>
    %8 = arith.subf %0, %7 : vector<16x32xf32>
    %9 = arith.mulf %8, %8 : vector<16x32xf32>
    %cst_6 = arith.constant dense<0.000000e+00> : vector<16xf32>
    %10 = vector.multi_reduction <add>, %9, %cst_6 [1] : vector<16x32xf32> to vector<16xf32>
    %11 = vector.shape_cast %10 : vector<16xf32> to vector<16x1xf32>
    %cst_7 = arith.constant 3.200000e+01 : f32
    %12 = vector.broadcast %cst_7 : f32 to vector<16x1xf32>
    %13 = arith.divf %11, %12 : vector<16x1xf32>
    %14 = vector.broadcast %6 : vector<16x1xf32> to vector<16x32xf32>
    %15 = arith.subf %0, %14 : vector<16x32xf32>
    %cst_8 = arith.constant 9.99999974E-6 : f32
    %16 = vector.broadcast %cst_8 : f32 to vector<16x1xf32>
    %17 = arith.addf %13, %16 : vector<16x1xf32>
    %18 = math.rsqrt %17 : vector<16x1xf32>
    %19 = vector.broadcast %18 : vector<16x1xf32> to vector<16x32xf32>
    %20 = arith.mulf %15, %19 : vector<16x32xf32>
    %21 = vector.broadcast %1 : vector<1x32xf32> to vector<16x32xf32>
    %22 = arith.mulf %20, %21 : vector<16x32xf32>
    %23 = vector.broadcast %2 : vector<1x32xf32> to vector<16x32xf32>
    %24 = arith.addf %22, %23 : vector<16x32xf32>
    %25 = arith.truncf %24 : vector<16x32xf32> to vector<16x32xbf16>
    %c0_9 = arith.constant 0 : index
    %c0_10 = arith.constant 0 : index
    %26 = vector.load %arg3[%c0_9, %c0_10] : memref<32x96xbf16, #tpu.memory_space<vmem>>, vector<32x96xbf16>
    %cst_11 = arith.constant dense<0.000000e+00> : vector<16x96xf32>
    %27 = tpu.matmul %25, %26, %cst_11 {dimension_numbers = #tpu.dot_dimension_numbers<[1], [0], [0], [1], [0, 0, 1, 1], [], []>} : vector<16x32xbf16>, vector<32x96xbf16>, vector<16x96xf32> -> vector<16x96xf32>
    %28 = vector.extract_strided_slice %27 {offsets = [0, 0], sizes = [16, 32], strides = [1, 1]} : vector<16x96xf32> to vector<16x32xf32>
    %29 = vector.shape_cast %28 : vector<16x32xf32> to vector<2x8x32xf32>
    %30 = vector.extract_strided_slice %27 {offsets = [0, 32], sizes = [16, 32], strides = [1, 1]} : vector<16x96xf32> to vector<16x32xf32>
    %31 = vector.shape_cast %30 : vector<16x32xf32> to vector<2x8x32xf32>
    %32 = vector.extract_strided_slice %27 {offsets = [0, 64], sizes = [16, 32], strides = [1, 1]} : vector<16x96xf32> to vector<16x32xf32>
    %33 = vector.shape_cast %32 : vector<16x32xf32> to vector<2x8x32xf32>
    %34 = arith.truncf %29 : vector<2x8x32xf32> to vector<2x8x32xbf16>
    %35 = arith.truncf %31 : vector<2x8x32xf32> to vector<2x8x32xbf16>
    "tpu.trace_start"() <{level = 10 : i32, message = "bqd,bkd->bqk"}> : () -> ()
    %cst_12 = arith.constant dense<0.000000e+00> : vector<2x8x8xf32>
    %36 = tpu.matmul %34, %35, %cst_12 {dimension_numbers = #tpu.dot_dimension_numbers<[2], [2], [1], [1], [0, 0, 0, 1, 1, 1], [0], [0]>} : vector<2x8x32xbf16>, vector<2x8x32xbf16>, vector<2x8x8xf32> -> vector<2x8x8xf32>
    "tpu.trace_stop"() : () -> ()
    %c0_13 = arith.constant 0 : index
    %c0_14 = arith.constant 0 : index
    %c0_15 = arith.constant 0 : index
    %37 = vector.load %arg1[%c0_13, %c0_14, %c0_15] : memref<2x8x8xf32, #tpu.memory_space<vmem>>, vector<2x8x8xf32>
    %38 = arith.addf %36, %37 : vector<2x8x8xf32>
    %cst_16 = arith.constant dense<0xFF800000> : vector<2x8xf32>
    %39 = vector.multi_reduction <maximumf>, %38, %cst_16 [2] : vector<2x8x8xf32> to vector<2x8xf32>
    %40 = vector.shape_cast %39 : vector<2x8xf32> to vector<2x8x1xf32>
    %41 = vector.broadcast %40 : vector<2x8x1xf32> to vector<2x8x8xf32>
    %42 = arith.subf %38, %41 : vector<2x8x8xf32>
    %43 = math.exp %42 : vector<2x8x8xf32>
    %cst_17 = arith.constant dense<0.000000e+00> : vector<2x8xf32>
    %44 = vector.multi_reduction <add>, %43, %cst_17 [2] : vector<2x8x8xf32> to vector<2x8xf32>
    %45 = vector.shape_cast %44 : vector<2x8xf32> to vector<2x8x1xf32>
    %46 = tpu.reciprocal %45 {approx = true} : vector<2x8x1xf32> -> vector<2x8x1xf32>
    %47 = vector.broadcast %46 : vector<2x8x1xf32> to vector<2x8x8xf32>
    %48 = arith.mulf %43, %47 : vector<2x8x8xf32>
    %49 = arith.truncf %48 : vector<2x8x8xf32> to vector<2x8x8xbf16>
    %50 = arith.truncf %33 : vector<2x8x32xf32> to vector<2x8x32xbf16>
    "tpu.trace_start"() <{level = 10 : i32, message = "bqk,bkd->bqd"}> : () -> ()
    %cst_18 = arith.constant dense<0.000000e+00> : vector<2x8x32xf32>
    %51 = tpu.matmul %49, %50, %cst_18 {dimension_numbers = #tpu.dot_dimension_numbers<[2], [1], [1], [2], [0, 0, 0, 1, 1, 2], [0], [0]>} : vector<2x8x8xbf16>, vector<2x8x32xbf16>, vector<2x8x32xf32> -> vector<2x8x32xf32>
    "tpu.trace_stop"() : () -> ()
    %52 = vector.shape_cast %51 : vector<2x8x32xf32> to vector<16x32xf32>
    %53 = arith.truncf %52 : vector<16x32xf32> to vector<16x32xbf16>
    %c0_19 = arith.constant 0 : index
    %c0_20 = arith.constant 0 : index
    %54 = vector.load %arg4[%c0_19, %c0_20] : memref<32x32xbf16, #tpu.memory_space<vmem>>, vector<32x32xbf16>
    %cst_21 = arith.constant dense<0.000000e+00> : vector<16x32xf32>
    %55 = tpu.matmul %53, %54, %cst_21 {dimension_numbers = #tpu.dot_dimension_numbers<[1], [0], [0], [1], [0, 0, 1, 1], [], []>} : vector<16x32xbf16>, vector<32x32xbf16>, vector<16x32xf32> -> vector<16x32xf32>
    %56 = arith.addf %0, %55 : vector<16x32xf32>
    %c0_22 = arith.constant 0 : index
    %c0_23 = arith.constant 0 : index
    %57 = vector.load %arg7[%c0_22, %c0_23] : memref<1x32xf32, #tpu.memory_space<vmem>>, vector<1x32xf32>
    %c0_24 = arith.constant 0 : index
    %c0_25 = arith.constant 0 : index
    %58 = vector.load %arg8[%c0_24, %c0_25] : memref<1x32xf32, #tpu.memory_space<vmem>>, vector<1x32xf32>
    %cst_26 = arith.constant dense<0.000000e+00> : vector<16xf32>
    %59 = vector.multi_reduction <add>, %56, %cst_26 [1] : vector<16x32xf32> to vector<16xf32>
    %60 = vector.shape_cast %59 : vector<16xf32> to vector<16x1xf32>
    %cst_27 = arith.constant 3.200000e+01 : f32
    %61 = vector.broadcast %cst_27 : f32 to vector<16x1xf32>
    %62 = arith.divf %60, %61 : vector<16x1xf32>
    %63 = vector.broadcast %62 : vector<16x1xf32> to vector<16x32xf32>
    %64 = arith.subf %56, %63 : vector<16x32xf32>
    %65 = arith.mulf %64, %64 : vector<16x32xf32>
    %cst_28 = arith.constant dense<0.000000e+00> : vector<16xf32>
    %66 = vector.multi_reduction <add>, %65, %cst_28 [1] : vector<16x32xf32> to vector<16xf32>
    %67 = vector.shape_cast %66 : vector<16xf32> to vector<16x1xf32>
    %cst_29 = arith.constant 3.200000e+01 : f32
    %68 = vector.broadcast %cst_29 : f32 to vector<16x1xf32>
    %69 = arith.divf %67, %68 : vector<16x1xf32>
    %70 = vector.broadcast %62 : vector<16x1xf32> to vector<16x32xf32>
    %71 = arith.subf %56, %70 : vector<16x32xf32>
    %cst_30 = arith.constant 9.99999974E-6 : f32
    %72 = vector.broadcast %cst_30 : f32 to vector<16x1xf32>
    %73 = arith.addf %69, %72 : vector<16x1xf32>
    %74 = math.rsqrt %73 : vector<16x1xf32>
    %75 = vector.broadcast %74 : vector<16x1xf32> to vector<16x32xf32>
    %76 = arith.mulf %71, %75 : vector<16x32xf32>
    %77 = vector.broadcast %57 : vector<1x32xf32> to vector<16x32xf32>
    %78 = arith.mulf %76, %77 : vector<16x32xf32>
    %79 = vector.broadcast %58 : vector<1x32xf32> to vector<16x32xf32>
    %80 = arith.addf %78, %79 : vector<16x32xf32>
    %81 = arith.truncf %80 : vector<16x32xf32> to vector<16x32xbf16>
    %c0_31 = arith.constant 0 : index
    %c0_32 = arith.constant 0 : index
    %82 = vector.load %arg9[%c0_31, %c0_32] : memref<32x128xbf16, #tpu.memory_space<vmem>>, vector<32x128xbf16>
    %cst_33 = arith.constant dense<0.000000e+00> : vector<16x128xf32>
    %83 = tpu.matmul %81, %82, %cst_33 {dimension_numbers = #tpu.dot_dimension_numbers<[1], [0], [0], [1], [0, 0, 1, 1], [], []>} : vector<16x32xbf16>, vector<32x128xbf16>, vector<16x128xf32> -> vector<16x128xf32>
    %c0_34 = arith.constant 0 : index
    %c0_35 = arith.constant 0 : index
    %84 = vector.load %arg10[%c0_34, %c0_35] : memref<1x128xf32, #tpu.memory_space<vmem>>, vector<1x128xf32>
    %85 = vector.broadcast %84 : vector<1x128xf32> to vector<16x128xf32>
    %86 = arith.addf %83, %85 : vector<16x128xf32>
    %cst_36 = arith.constant 5.000000e-01 : f32
    %87 = vector.broadcast %cst_36 : f32 to vector<16x128xf32>
    %88 = arith.mulf %87, %86 : vector<16x128xf32>
    %cst_37 = arith.constant 4.471500e-02 : f32
    %89 = vector.broadcast %cst_37 : f32 to vector<16x128xf32>
    %90 = arith.mulf %89, %86 : vector<16x128xf32>
    %91 = arith.mulf %90, %86 : vector<16x128xf32>
    %92 = arith.mulf %91, %86 : vector<16x128xf32>
    %93 = arith.addf %86, %92 : vector<16x128xf32>
    %cst_38 = arith.constant 0.797884583 : f32
    %94 = vector.broadcast %cst_38 : f32 to vector<16x128xf32>
    %95 = arith.mulf %94, %93 : vector<16x128xf32>
    %96 = math.tanh %95 : vector<16x128xf32>
    %cst_39 = arith.constant 1.000000e+00 : f32
    %97 = vector.broadcast %cst_39 : f32 to vector<16x128xf32>
    %98 = arith.addf %97, %96 : vector<16x128xf32>
    %99 = arith.mulf %88, %98 : vector<16x128xf32>
    %100 = arith.truncf %99 : vector<16x128xf32> to vector<16x128xbf16>
    %c0_40 = arith.constant 0 : index
    %c0_41 = arith.constant 0 : index
    %101 = vector.load %arg11[%c0_40, %c0_41] : memref<128x32xbf16, #tpu.memory_space<vmem>>, vector<128x32xbf16>
    %cst_42 = arith.constant dense<0.000000e+00> : vector<16x32xf32>
    %102 = tpu.matmul %100, %101, %cst_42 {dimension_numbers = #tpu.dot_dimension_numbers<[1], [0], [0], [1], [0, 0, 1, 1], [], []>} : vector<16x128xbf16>, vector<128x32xbf16>, vector<16x32xf32> -> vector<16x32xf32>
    %103 = arith.addf %56, %102 : vector<16x32xf32>
    %c0_43 = arith.constant 0 : index
    %c0_44 = arith.constant 0 : index
    %104 = vector.load %arg12[%c0_43, %c0_44] : memref<1x32xf32, #tpu.memory_space<vmem>>, vector<1x32xf32>
    %105 = vector.broadcast %104 : vector<1x32xf32> to vector<16x32xf32>
    %106 = arith.addf %103, %105 : vector<16x32xf32>
    %c0_45 = arith.constant 0 : index
    %c0_46 = arith.constant 0 : index
    %107 = vector.load %arg16[%c0_45, %c0_46] : memref<16x32xf32, #tpu.memory_space<vmem>>, vector<16x32xf32>
    tpu.vector_store %arg16[%c0_45, %c0_46], %106 {strides = array<i32>} : memref<16x32xf32, #tpu.memory_space<vmem>>, vector<16x32xf32>,
    %108 = vector.extract_strided_slice %106 {offsets = [7, 0], sizes = [1, 32], strides = [1, 1]} : vector<16x32xf32> to vector<1x32xf32>
    %c0_47 = arith.constant 0 : index
    %c0_48 = arith.constant 0 : index
    %109 = vector.load %arg13[%c0_47, %c0_48] : memref<1x32xf32, #tpu.memory_space<vmem>>, vector<1x32xf32>
    %110 = arith.mulf %108, %109 : vector<1x32xf32>
    %cst_49 = arith.constant dense<0.000000e+00> : vector<1xf32>
    %111 = vector.multi_reduction <add>, %110, %cst_49 [1] : vector<1x32xf32> to vector<1xf32>
    %112 = vector.shape_cast %111 : vector<1xf32> to vector<1x1xf32>
    %c0_50 = arith.constant 0 : index
    %113 = memref.load %arg2[%c0_50] : memref<2xf32, #tpu.memory_space<smem>>
    %c0_51 = arith.constant 0 : index
    %114 = memref.load %arg14[%c0_51] : memref<1xf32, #tpu.memory_space<smem>>
    %115 = arith.mulf %113, %114 : f32
    %116 = vector.broadcast %115 : f32 to vector<1x1xf32>
    %117 = arith.addf %112, %116 : vector<1x1xf32>
    %c0_52 = arith.constant 0 : index
    %118 = memref.load %arg15[%c0_52] : memref<1xf32, #tpu.memory_space<smem>>
    %119 = vector.broadcast %118 : f32 to vector<1x1xf32>
    %120 = arith.addf %117, %119 : vector<1x1xf32>
    %c0_53 = arith.constant 0 : index
    %c0_54 = arith.constant 0 : index
    %121 = vector.load %arg17[%c0_53, %c0_54] : memref<2x1xf32, #tpu.memory_space<vmem>>, vector<1x1xf32>
    tpu.vector_store %arg17[%c0_53, %c0_54], %120 {strides = array<i32>} : memref<2x1xf32, #tpu.memory_space<vmem>>, vector<1x1xf32>,
    %122 = vector.extract_strided_slice %106 {offsets = [15, 0], sizes = [1, 32], strides = [1, 1]} : vector<16x32xf32> to vector<1x32xf32>
    %c0_55 = arith.constant 0 : index
    %c0_56 = arith.constant 0 : index
    %123 = vector.load %arg13[%c0_55, %c0_56] : memref<1x32xf32, #tpu.memory_space<vmem>>, vector<1x32xf32>
    %124 = arith.mulf %122, %123 : vector<1x32xf32>
    %cst_57 = arith.constant dense<0.000000e+00> : vector<1xf32>
    %125 = vector.multi_reduction <add>, %124, %cst_57 [1] : vector<1x32xf32> to vector<1xf32>
    %126 = vector.shape_cast %125 : vector<1xf32> to vector<1x1xf32>
    %c1 = arith.constant 1 : index
    %127 = memref.load %arg2[%c1] : memref<2xf32, #tpu.memory_space<smem>>
    %c0_58 = arith.constant 0 : index
    %128 = memref.load %arg14[%c0_58] : memref<1xf32, #tpu.memory_space<smem>>
    %129 = arith.mulf %127, %128 : f32
    %130 = vector.broadcast %129 : f32 to vector<1x1xf32>
    %131 = arith.addf %126, %130 : vector<1x1xf32>
    %c0_59 = arith.constant 0 : index
    %132 = memref.load %arg15[%c0_59] : memref<1xf32, #tpu.memory_space<smem>>
    %133 = vector.broadcast %132 : f32 to vector<1x1xf32>
    %134 = arith.addf %131, %133 : vector<1x1xf32>
    %c1_60 = arith.constant 1 : index
    %c0_61 = arith.constant 0 : index
    %135 = vector.load %arg17[%c1_60, %c0_61] : memref<2x1xf32, #tpu.memory_space<vmem>>, vector<1x1xf32>
    tpu.vector_store %arg17[%c1_60, %c0_61], %134 {strides = array<i32>} : memref<2x1xf32, #tpu.memory_space<vmem>>, vector<1x1xf32>,
    return
  }
}

</mosaic_0001>

<llo_original>
// kernel: nvd_forward.1
$region0: #{nvd_forward.1}
  #allocation0 [shape = 'u32[]', space=smem, size = 0x4, offset = 0x4, fixed_abs, tag = 'smem constant byte address 0x4 - core index']
  #allocation1 [shape = 'u32[72,128]{1,0:T(1,128)}', space=vmem, size = 0x9000, scoped, tag = 'internal scratch']
  #allocation2 [shape = 'f32[1]{0:T(128)S(6)}', space=smem, size = 0x200, scoped, tag = 'scoped memory for nvd_forward.1']
  #allocation3 [shape = 'f32[1]{0:T(128)S(6)}', space=smem, size = 0x200, scoped, tag = 'scoped memory for nvd_forward.1']
  %s0 = inlined_call_operand.vmem [shape: f32[16,32], index: 0, kind: input, shape index: {}]
  %s1 = inlined_call_operand.vmem [shape: f32[2,8,8], index: 1, kind: input, shape index: {}]
  %s2 = inlined_call_operand.vmem [shape: f32[2], index: 2, kind: input, shape index: {}]
  %s3 = inlined_call_operand.vmem [shape: bf16[32,96], index: 3, kind: input, shape index: {}]
  %s4 = inlined_call_operand.vmem [shape: bf16[32,32], index: 4, kind: input, shape index: {}]
  %s5 = inlined_call_operand.vmem [shape: f32[1,32], index: 5, kind: input, shape index: {}]
  %s6 = inlined_call_operand.vmem [shape: f32[1,32], index: 6, kind: input, shape index: {}]
  %s7 = inlined_call_operand.vmem [shape: f32[1,32], index: 7, kind: input, shape index: {}]
  %s8 = inlined_call_operand.vmem [shape: f32[1,32], index: 8, kind: input, shape index: {}]
  %s9 = inlined_call_operand.vmem [shape: bf16[32,128], index: 9, kind: input, shape index: {}]
  %s10 = inlined_call_operand.vmem [shape: f32[1,128], index: 10, kind: input, shape index: {}]
  %s11 = inlined_call_operand.vmem [shape: bf16[128,32], index: 11, kind: input, shape index: {}]
  %s12 = inlined_call_operand.vmem [shape: f32[1,32], index: 12, kind: input, shape index: {}]
  %s13 = inlined_call_operand.vmem [shape: f32[1,32], index: 13, kind: input, shape index: {}]
  %s14 = inlined_call_operand.<no memory space> [shape: f32[1], index: 14, kind: input, shape index: {}]
  %s15 = inlined_call_operand.<no memory space> [shape: f32[1], index: 15, kind: input, shape index: {}]
  %s16 = inlined_call_operand.hbm [shape: f32[16,32], index: 16, kind: output, shape index: {0}]
  %s17 = inlined_call_operand.vmem [shape: f32[2,1], index: 17, kind: output, shape index: {1}]
  %18 = xla_tuple %s16, %s17
  %s19 = sld [smem:[#allocation0]]
  $region86: #{nvd_forward.1} parent=0
    _
  %s21 = ssub.s32 1, %s19
  %s22 = scalar_select 0, %s21, %s19
  %23 = sst [smem:[#allocation2]] %s14
  %24 = sst [smem:[#allocation3]] %s15
  $region1: #{nvd_forward.1} parent=0
    #allocation4 [shape = 'u8[512]{0}', space=smem, size = 0x200, scoped, tag = 'input window, operand 2, single buffered']
    #allocation5 [shape = 's32[1]{0}', space=sflag, size = 0x4, scoped, tag = 'scoped memory for nvd_forward.1']
    #allocation6 [shape = 's32[1]{0}', space=sflag, size = 0x4, scoped, tag = 'scoped memory for nvd_forward.1']
    #allocation7 [shape = 'u8[8192]{0}', space=vmem, size = 0x2000, scoped, tag = 'output window, operand 0, single buffered']
    %25 = vsyncpa [#allocation6], 0
    %26 = vsyncpa [#allocation5], 0
    // Predicated region
    $region2: #{nvd_forward.1} parent=1 // pred_check
      _
    $region3: #{nvd_forward.1} parent=1 // pred_check_branch
      %28 = sbr.rel (0) target = $region5
    $region4: #{nvd_forward.1} parent=1 // pred_region
      _
    $region5: #{nvd_forward.1} parent=1 // pred_fallthru
      _
    // Predicated region
    $region6: #{nvd_forward.1} parent=1 // pred_check
      _
    $region7: #{nvd_forward.1} parent=1 // pred_check_branch
      %30 = sbr.rel (0) target = $region9
    $region8: #{nvd_forward.1} parent=1 // pred_region
      _
    $region9: #{nvd_forward.1} parent=1 // pred_fallthru
      _
    // Predicated region
    $region10: #{nvd_forward.1} parent=1 // pred_check
      _
    $region11: #{nvd_forward.1} parent=1 // pred_check_branch
      %32 = sbr.rel (0) target = $region13
    $region12: #{nvd_forward.1} parent=1 // pred_region
      %34 = vsyncadd [#allocation6], 0
      %s36 = sshll.u32 %s2, 4
      %s37 = int_to_ptr.vmem [resolvable:$true] %s36
      %39 = dma.vmem_to_smem %s37, 16, [#allocation4], [#allocation6]
    $region13: #{nvd_forward.1} parent=1 // pred_fallthru
      _
    // Predicated region
    $region14: #{nvd_forward.1} parent=1 // pred_check
      _
    $region15: #{nvd_forward.1} parent=1 // pred_check_branch
      %41 = sbr.rel (0) target = $region17
    $region16: #{nvd_forward.1} parent=1 // pred_region
      _
    $region17: #{nvd_forward.1} parent=1 // pred_fallthru
      _
    // Predicated region
    $region18: #{nvd_forward.1} parent=1 // pred_check
      _
    $region19: #{nvd_forward.1} parent=1 // pred_check_branch
      %43 = sbr.rel (0) target = $region21
    $region20: #{nvd_forward.1} parent=1 // pred_region
      _
    $region21: #{nvd_forward.1} parent=1 // pred_fallthru
      _
    // Predicated region
    $region22: #{nvd_forward.1} parent=1 // pred_check
      _
    $region23: #{nvd_forward.1} parent=1 // pred_check_branch
      %45 = sbr.rel (0) target = $region25
    $region24: #{nvd_forward.1} parent=1 // pred_region
      _
    $region25: #{nvd_forward.1} parent=1 // pred_fallthru
      _
    // Predicated region
    $region26: #{nvd_forward.1} parent=1 // pred_check
      _
    $region27: #{nvd_forward.1} parent=1 // pred_check_branch
      %47 = sbr.rel (0) target = $region29
    $region28: #{nvd_forward.1} parent=1 // pred_region
      _
    $region29: #{nvd_forward.1} parent=1 // pred_fallthru
      _
    // Predicated region
    $region30: #{nvd_forward.1} parent=1 // pred_check
      _
    $region31: #{nvd_forward.1} parent=1 // pred_check_branch
      %49 = sbr.rel (0) target = $region33
    $region32: #{nvd_forward.1} parent=1 // pred_region
      _
    $region33: #{nvd_forward.1} parent=1 // pred_fallthru
      _
    // Predicated region
    $region34: #{nvd_forward.1} parent=1 // pred_check
      _
    $region35: #{nvd_forward.1} parent=1 // pred_check_branch
      %51 = sbr.rel (0) target = $region37
    $region36: #{nvd_forward.1} parent=1 // pred_region
      _
    $region37: #{nvd_forward.1} parent=1 // pred_fallthru
      _
    // Predicated region
    $region38: #{nvd_forward.1} parent=1 // pred_check
      _
    $region39: #{nvd_forward.1} parent=1 // pred_check_branch
      %53 = sbr.rel (0) target = $region41
    $region40: #{nvd_forward.1} parent=1 // pred_region
      _
    $region41: #{nvd_forward.1} parent=1 // pred_fallthru
      _
    // Predicated region
    $region42: #{nvd_forward.1} parent=1 // pred_check
      _
    $region43: #{nvd_forward.1} parent=1 // pred_check_branch
      %55 = sbr.rel (0) target = $region45
    $region44: #{nvd_forward.1} parent=1 // pred_region
      _
    $region45: #{nvd_forward.1} parent=1 // pred_fallthru
      _
    // Predicated region
    $region46: #{nvd_forward.1} parent=1 // pred_check
      _
    $region47: #{nvd_forward.1} parent=1 // pred_check_branch
      %57 = sbr.rel (0) target = $region49
    $region48: #{nvd_forward.1} parent=1 // pred_region
      _
    $region49: #{nvd_forward.1} parent=1 // pred_fallthru
      _
    // Predicated region
    $region50: #{nvd_forward.1} parent=1 // pred_check
      _
    $region51: #{nvd_forward.1} parent=1 // pred_check_branch
      %59 = sbr.rel (0) target = $region53
    $region52: #{nvd_forward.1} parent=1 // pred_region
      _
    $region53: #{nvd_forward.1} parent=1 // pred_fallthru
      _
    // Predicated region
    $region54: #{nvd_forward.1} parent=1 // pred_check
      _
    $region55: #{nvd_forward.1} parent=1 // pred_check_branch
      %61 = sbr.rel (0) target = $region57
    $region56: #{nvd_forward.1} parent=1 // pred_region
      _
    $region57: #{nvd_forward.1} parent=1 // pred_fallthru
      _
    // Predicated region
    $region58: #{nvd_forward.1} parent=1 // pred_check
      _
    $region59: #{nvd_forward.1} parent=1 // pred_check_branch
      %63 = sbr.rel (0) target = $region61
    $region60: #{nvd_forward.1} parent=1 // pred_region
      _
    $region61: #{nvd_forward.1} parent=1 // pred_fallthru
      _
    // Predicated region
    $region62: #{nvd_forward.1} parent=1 // pred_check
      _
    $region63: #{nvd_forward.1} parent=1 // pred_check_branch
      %65 = sbr.rel (0) target = $region65
    $region64: #{nvd_forward.1} parent=1 // pred_region
      _
    $region65: #{nvd_forward.1} parent=1 // pred_fallthru
      _
    // Predicated region
    $region66: #{nvd_forward.1} parent=1 // pred_check
      _
    $region67: #{nvd_forward.1} parent=1 // pred_check_branch
      %67 = sbr.rel (0) target = $region69
    $region68: #{nvd_forward.1} parent=1 // pred_region
      %69 = dma.done [#allocation6], 16
    $region69: #{nvd_forward.1} parent=1 // pred_fallthru
      _
    %70 = sfence
    %v72 = vld [vmem:[%s0] sm:$0xff]
    %v73 = vld [vmem:[%s0 + $0x8] sm:$0xff]
    %v74 = vld [vmem:[%s5] sm:$0x1]
    %v75 = vld [vmem:[%s6] sm:$0x1]
    %vm76 = vcmask 261120
    %v77 = vsel %vm76, %v72, 0.0
    %78 = vadd.xlane.f32.xlu0 %v77
    %v79 = vpop.xlane.xlu0 %78
    %v80 = vsel %vm76, %v73, 0.0
    %81 = vadd.xlane.f32.xlu0 %v80
    %v82 = vpop.xlane.xlu0 %81
    %v83 = vrcp.pop 32.0
    %v84 = vmul.f32 32.0, %v83
    %v85 = vsub.f32 1.0, %v84
    %v86 = vmul.f32 %v83, %v85
    %v87 = vadd.f32 %v83, %v86
    %vm88 = vweird.f32 %v83
    %v89 = vsel %vm88, %v83, %v87
    %v90 = vmul.f32 %v79, %v89
    %v91 = vmul.f32 %v82, %v89
    %v92 = vsub.f32 %v72, %v90
    %v93 = vsub.f32 %v73, %v91
    %v94 = vmul.f32 %v92, %v92
    %v95 = vmul.f32 %v93, %v93
    %v96 = vsel %vm76, %v94, 0.0
    %97 = vadd.xlane.f32.xlu0 %v96
    %v98 = vpop.xlane.xlu0 %97
    %v99 = vsel %vm76, %v95, 0.0
    %100 = vadd.xlane.f32.xlu0 %v99
    %v101 = vpop.xlane.xlu0 %100
    %v102 = vmul.f32 %v98, %v89
    %v103 = vmul.f32 %v101, %v89
    %v104 = vadd.f32 %v102, 1e-05
    %v105 = vadd.f32 %v103, 1e-05
    %v106 = vrsqrt.pop %v104
    %v107 = vmul.f32 %v106, %v104
    %v108 = vmul.f32 %v107, %v106
    %v109 = vmul.f32 0.5, %v108
    %v110 = vsub.f32 1.5, %v109
    %v111 = vmul.f32 %v106, %v110
    %vm112 = vweird.f32 %v104
    %vm113 = vweird.f32 %v106
    %vm114 = vmor %vm112, %vm113
    %v115 = vsel %vm114, %v106, %v111
    %v116 = vrsqrt.pop %v105
    %v117 = vmul.f32 %v116, %v105
    %v118 = vmul.f32 %v117, %v116
    %v119 = vmul.f32 0.5, %v118
    %v120 = vsub.f32 1.5, %v119
    %v121 = vmul.f32 %v116, %v120
    %vm122 = vweird.f32 %v105
    %vm123 = vweird.f32 %v116
    %vm124 = vmor %vm122, %vm123
    %v125 = vsel %vm124, %v116, %v121
    %v126 = vmul.f32 %v92, %v115
    %v127 = vmul.f32 %v93, %v125
    %v129 = vperm.slane %v74, 0
    %v131 = vmul.f32 %v126, %v129
    %v132 = vmul.f32 %v127, %v129
    %v134 = vperm.slane %v75, 0
    %v136 = vadd.f32 %v131, %v134
    %v137 = vadd.f32 %v132, %v134
    %v138 = vpack.c.bf16 %v137, %v136
    %v139 = vld [vmem:[%s3] sm:$0xf]
    %v140 = vld [vmem:[%s3 + $0x4] sm:$0xf]
    %v141 = vld [vmem:[%s3 + $0x8] sm:$0xf]
    %v142 = vld [vmem:[%s3 + $0xc] sm:$0xf]
    %v147 = vunpack.c.l.b16 %v139
    %v148 = vunpack.c.l.b16 %v140
    %v149 = vunpack.c.l.b16 %v141
    %v150 = vunpack.c.l.b16 %v142
    %v151 = vpack.c.b16 %v148, %v147
    %v152 = vpack.c.b16 %v150, %v149
    %v156 = vsel %vm76, %v138, 0
    %158 = vmatpush.bf16.msra.mxu0 0
    %159 = vmatpush.bf16.msra.mxu0 0
    %160 = vmatpush.bf16.msra.mxu0 0
    %161 = vmatpush.bf16.msra.mxu0 0
    %162 = vmatpush.bf16.msra.mxu0 0
    %163 = vmatpush.bf16.msra.mxu0 0
    %164 = vmatpush.bf16.msra.mxu0 %v152
    %165 = vmatpush.bf16.msra.mxu0 %v151
    %166 = vmatmul.bf16.gmra.mxu0 %v156
    %v167 = vpop.f32.mrf.mxu0
    %v168 = vadd.f32 0.0, %v167
    %v169 = vpop.f32.mrf.mxu0
    %v170 = vadd.f32 0.0, %v169
    %171 = vdwg.mxu0
    %v172 = vpack.c.bf16 %v168, %v168
    %v173 = vpack.c.bf16 %v170, %v170
    %v174 = vld [vmem:[%s1] sm:$0xff]
    %v175 = vld [vmem:[%s1 + $0x8] sm:$0xff]
    %v177 = vunpack.c.l.b16 %v172
    %v178 = vpack.c.b16 %v177, %v177
    %179 = vrot.lane.b32.xlu0 %v178, 96
    %v180 = vpop.permute.xlu0 %179
    %v182 = vsel %vm76, %v172, 0
    %v185 = vsel %vm76, %v180, 0
    %187 = vmatpush.bf16.xpose.msra.mxu0 0
    %188 = vmatpush.bf16.xpose.msra.mxu0 0
    %189 = vmatpush.bf16.xpose.msra.mxu0 0
    %190 = vmatpush.bf16.xpose.msra.mxu0 0
    %191 = vmatpush.bf16.xpose.msra.mxu0 0
    %192 = vmatpush.bf16.xpose.msra.mxu0 0
    %193 = vmatpush.bf16.xpose.msra.mxu0 0
    %194 = vmatpush.bf16.xpose.msra.mxu0 %v185
    %195 = vmatmul.bf16.gmra.mxu0 %v182
    %v196 = vpop.f32.mrf.mxu0
    %v197 = vadd.f32 %v174, %v196
    %v198 = vpop.f32.mrf.mxu0
    %199 = vdwg.mxu0
    %v201 = vunpack.c.l.b16 %v173
    %v202 = vpack.c.b16 %v201, %v201
    %203 = vrot.lane.b32.xlu0 %v202, 96
    %v204 = vpop.permute.xlu0 %203
    %v206 = vsel %vm76, %v173, 0
    %v209 = vsel %vm76, %v204, 0
    %211 = vmatpush.bf16.xpose.msra.mxu0 0
    %212 = vmatpush.bf16.xpose.msra.mxu0 0
    %213 = vmatpush.bf16.xpose.msra.mxu0 0
    %214 = vmatpush.bf16.xpose.msra.mxu0 0
    %215 = vmatpush.bf16.xpose.msra.mxu0 0
    %216 = vmatpush.bf16.xpose.msra.mxu0 0
    %217 = vmatpush.bf16.xpose.msra.mxu0 0
    %218 = vmatpush.bf16.xpose.msra.mxu0 %v209
    %219 = vmatmul.bf16.gmra.mxu0 %v206
    %v220 = vpop.f32.mrf.mxu0
    %v221 = vadd.f32 %v175, %v220
    %v222 = vpop.f32.mrf.mxu0
    %223 = vdwg.mxu0
    %vm224 = vcmask 64512
    %v225 = vsel %vm224, %v197, -inf
    %226 = vmax.xlane.f32.xlu0 %v225
    %v227 = vpop.xlane.xlu0 %226
    %v228 = vsel %vm224, %v221, -inf
    %229 = vmax.xlane.f32.xlu0 %v228
    %v230 = vpop.xlane.xlu0 %229
    %v231 = vsub.f32 %v197, %v227
    %v232 = vsub.f32 %v221, %v230
    %v233 = vmul.f32 %v231, 1.442695
    %v234 = vpow.pop %v233
    %v235 = vmul.f32 %v232, 1.442695
    %v236 = vpow.pop %v235
    %v237 = vsel %vm224, %v234, 0.0
    %238 = vadd.xlane.f32.xlu0 %v237
    %v239 = vpop.xlane.xlu0 %238
    %v240 = vsel %vm224, %v236, 0.0
    %241 = vadd.xlane.f32.xlu0 %v240
    %v242 = vpop.xlane.xlu0 %241
    %v243 = vrcp.pop %v239
    %v244 = vrcp.pop %v242
    %v245 = vmul.f32 %v234, %v243
    %v246 = vmul.f32 %v236, %v244
    %v247 = vpack.c.bf16 %v245, %v245
    %v248 = vpack.c.bf16 %v246, %v246
    %249 = vrot.lane.b32.xlu0 %v178, 64
    %v250 = vpop.permute.xlu0 %249
    %v252 = vsel %vm224, %v247, 0
    %vm254 = vcmask 1043456
    %v256 = vsel %vm254, %v250, 0
    %258 = vmatpush.bf16.msra.mxu0 0
    %259 = vmatpush.bf16.msra.mxu0 0
    %260 = vmatpush.bf16.msra.mxu0 0
    %261 = vmatpush.bf16.msra.mxu0 0
    %262 = vmatpush.bf16.msra.mxu0 0
    %263 = vmatpush.bf16.msra.mxu0 0
    %264 = vmatpush.bf16.msra.mxu0 0
    %265 = vmatpush.bf16.msra.mxu0 %v256
    %266 = vmatmul.bf16.gmra.mxu0 %v252
    %v267 = vpop.f32.mrf.mxu0
    %v268 = vadd.f32 0.0, %v267
    %v269 = vpop.f32.mrf.mxu0
    %270 = vdwg.mxu0
    %271 = vrot.lane.b32.xlu0 %v202, 64
    %v272 = vpop.permute.xlu0 %271
    %v274 = vsel %vm224, %v248, 0
    %v277 = vsel %vm254, %v272, 0
    %279 = vmatpush.bf16.msra.mxu0 0
    %280 = vmatpush.bf16.msra.mxu0 0
    %281 = vmatpush.bf16.msra.mxu0 0
    %282 = vmatpush.bf16.msra.mxu0 0
    %283 = vmatpush.bf16.msra.mxu0 0
    %284 = vmatpush.bf16.msra.mxu0 0
    %285 = vmatpush.bf16.msra.mxu0 0
    %286 = vmatpush.bf16.msra.mxu0 %v277
    %287 = vmatmul.bf16.gmra.mxu0 %v274
    %v288 = vpop.f32.mrf.mxu0
    %v289 = vadd.f32 0.0, %v288
    %v290 = vpop.f32.mrf.mxu0
    %291 = vdwg.mxu0
    %v292 = vpack.c.bf16 %v289, %v268
    %v293 = vld [vmem:[%s4] sm:$0xf]
    %v294 = vld [vmem:[%s4 + $0x4] sm:$0xf]
    %v295 = vld [vmem:[%s4 + $0x8] sm:$0xf]
    %v296 = vld [vmem:[%s4 + $0xc] sm:$0xf]
    %v301 = vunpack.c.l.b16 %v293
    %v302 = vunpack.c.l.b16 %v294
    %v303 = vunpack.c.l.b16 %v295
    %v304 = vunpack.c.l.b16 %v296
    %v305 = vpack.c.b16 %v302, %v301
    %v306 = vpack.c.b16 %v304, %v303
    %v310 = vsel %vm76, %v292, 0
    %312 = vmatpush.bf16.msra.mxu0 0
    %313 = vmatpush.bf16.msra.mxu0 0
    %314 = vmatpush.bf16.msra.mxu0 0
    %315 = vmatpush.bf16.msra.mxu0 0
    %316 = vmatpush.bf16.msra.mxu0 0
    %317 = vmatpush.bf16.msra.mxu0 0
    %318 = vmatpush.bf16.msra.mxu0 %v306
    %319 = vmatpush.bf16.msra.mxu0 %v305
    %320 = vmatmul.bf16.gmra.mxu0 %v310
    %v321 = vpop.f32.mrf.mxu0
    %v322 = vadd.f32 0.0, %v321
    %v323 = vpop.f32.mrf.mxu0
    %v324 = vadd.f32 0.0, %v323
    %325 = vdwg.mxu0
    %v326 = vadd.f32 %v72, %v322
    %v327 = vadd.f32 %v73, %v324
    %v328 = vld [vmem:[%s7] sm:$0x1]
    %v329 = vld [vmem:[%s8] sm:$0x1]
    %v330 = vsel %vm76, %v326, 0.0
    %331 = vadd.xlane.f32.xlu0 %v330
    %v332 = vpop.xlane.xlu0 %331
    %v333 = vsel %vm76, %v327, 0.0
    %334 = vadd.xlane.f32.xlu0 %v333
    %v335 = vpop.xlane.xlu0 %334
    %v336 = vmul.f32 %v332, %v89
    %v337 = vmul.f32 %v335, %v89
    %v338 = vsub.f32 %v326, %v336
    %v339 = vsub.f32 %v327, %v337
    %v340 = vmul.f32 %v338, %v338
    %v341 = vmul.f32 %v339, %v339
    %v342 = vsel %vm76, %v340, 0.0
    %343 = vadd.xlane.f32.xlu0 %v342
    %v344 = vpop.xlane.xlu0 %343
    %v345 = vsel %vm76, %v341, 0.0
    %346 = vadd.xlane.f32.xlu0 %v345
    %v347 = vpop.xlane.xlu0 %346
    %v348 = vmul.f32 %v344, %v89
    %v349 = vmul.f32 %v347, %v89
    %v350 = vadd.f32 %v348, 1e-05
    %v351 = vadd.f32 %v349, 1e-05
    %v352 = vrsqrt.pop %v350
    %v353 = vmul.f32 %v352, %v350
    %v354 = vmul.f32 %v353, %v352
    %v355 = vmul.f32 0.5, %v354
    %v356 = vsub.f32 1.5, %v355
    %v357 = vmul.f32 %v352, %v356
    %vm358 = vweird.f32 %v350
    %vm359 = vweird.f32 %v352
    %vm360 = vmor %vm358, %vm359
    %v361 = vsel %vm360, %v352, %v357
    %v362 = vrsqrt.pop %v351
    %v363 = vmul.f32 %v362, %v351
    %v364 = vmul.f32 %v363, %v362
    %v365 = vmul.f32 0.5, %v364
    %v366 = vsub.f32 1.5, %v365
    %v367 = vmul.f32 %v362, %v366
    %vm368 = vweird.f32 %v351
    %vm369 = vweird.f32 %v362
    %vm370 = vmor %vm368, %vm369
    %v371 = vsel %vm370, %v362, %v367
    %v372 = vmul.f32 %v338, %v361
    %v373 = vmul.f32 %v339, %v371
    %v375 = vperm.slane %v328, 0
    %v377 = vmul.f32 %v372, %v375
    %v378 = vmul.f32 %v373, %v375
    %v380 = vperm.slane %v329, 0
    %v382 = vadd.f32 %v377, %v380
    %v383 = vadd.f32 %v378, %v380
    %v384 = vpack.c.bf16 %v383, %v382
    %v385 = vld [vmem:[%s9] sm:$0xf]
    %v386 = vld [vmem:[%s9 + $0x4] sm:$0xf]
    %v387 = vld [vmem:[%s9 + $0x8] sm:$0xf]
    %v388 = vld [vmem:[%s9 + $0xc] sm:$0xf]
    %v389 = vld [vmem:[%s10] sm:$0x1]
    %v391 = vperm.slane %v389, 0
    %v397 = vunpack.c.l.b16 %v385
    %v398 = vunpack.c.l.b16 %v386
    %v399 = vunpack.c.l.b16 %v387
    %v400 = vunpack.c.l.b16 %v388
    %v401 = vpack.c.b16 %v398, %v397
    %v402 = vpack.c.b16 %v400, %v399
    %v406 = vsel %vm76, %v384, 0
    %408 = vmatpush.bf16.msra.mxu0 0
    %409 = vmatpush.bf16.msra.mxu0 0
    %410 = vmatpush.bf16.msra.mxu0 0
    %411 = vmatpush.bf16.msra.mxu0 0
    %412 = vmatpush.bf16.msra.mxu0 0
    %413 = vmatpush.bf16.msra.mxu0 0
    %414 = vmatpush.bf16.msra.mxu0 %v402
    %415 = vmatpush.bf16.msra.mxu0 %v401
    %416 = vmatmul.bf16.gmra.mxu0 %v406
    %v417 = vpop.f32.mrf.mxu0
    %v418 = vadd.f32 %v391, %v417
    %v419 = vpop.f32.mrf.mxu0
    %v420 = vadd.f32 %v391, %v419
    %421 = vdwg.mxu0
    %v422 = vmul.f32 %v418, 0.5
    %v423 = vmul.f32 %v420, 0.5
    %v424 = vmul.f32 %v418, 0.044715
    %v425 = vmul.f32 %v420, 0.044715
    %v426 = vmul.f32 %v424, %v418
    %v427 = vmul.f32 %v425, %v420
    %v428 = vmul.f32 %v426, %v418
    %v429 = vmul.f32 %v427, %v420
    %v430 = vadd.f32 %v418, %v428
    %v431 = vadd.f32 %v420, %v429
    %v432 = vmul.f32 %v430, 0.7978846
    %v433 = vmul.f32 %v431, 0.7978846
    %v434 = vtanh.pop %v432
    %v435 = vtanh.pop %v433
    %v436 = vadd.f32 %v434, 1.0
    %v437 = vadd.f32 %v435, 1.0
    %v438 = vmul.f32 %v422, %v436
    %v439 = vmul.f32 %v423, %v437
    %v440 = vpack.c.bf16 %v439, %v438
    %v441 = vld [vmem:[%s11] sm:$0xf]
    %v442 = vld [vmem:[%s11 + $0x4] sm:$0xf]
    %v443 = vld [vmem:[%s11 + $0x8] sm:$0xf]
    %v444 = vld [vmem:[%s11 + $0xc] sm:$0xf]
    %v445 = vld [vmem:[%s11 + $0x10] sm:$0xf]
    %v446 = vld [vmem:[%s11 + $0x14] sm:$0xf]
    %v447 = vld [vmem:[%s11 + $0x18] sm:$0xf]
    %v448 = vld [vmem:[%s11 + $0x1c] sm:$0xf]
    %v449 = vld [vmem:[%s11 + $0x20] sm:$0xf]
    %v450 = vld [vmem:[%s11 + $0x24] sm:$0xf]
    %v451 = vld [vmem:[%s11 + $0x28] sm:$0xf]
    %v452 = vld [vmem:[%s11 + $0x2c] sm:$0xf]
    %v453 = vld [vmem:[%s11 + $0x30] sm:$0xf]
    %v454 = vld [vmem:[%s11 + $0x34] sm:$0xf]
    %v455 = vld [vmem:[%s11 + $0x38] sm:$0xf]
    %v456 = vld [vmem:[%s11 + $0x3c] sm:$0xf]
    %v473 = vunpack.c.l.b16 %v441
    %v474 = vunpack.c.l.b16 %v442
    %v475 = vunpack.c.l.b16 %v443
    %v476 = vunpack.c.l.b16 %v444
    %v477 = vunpack.c.l.b16 %v445
    %v478 = vunpack.c.l.b16 %v446
    %v479 = vunpack.c.l.b16 %v447
    %v480 = vunpack.c.l.b16 %v448
    %v481 = vunpack.c.l.b16 %v449
    %v482 = vunpack.c.l.b16 %v450
    %v483 = vunpack.c.l.b16 %v451
    %v484 = vunpack.c.l.b16 %v452
    %v485 = vunpack.c.l.b16 %v453
    %v486 = vunpack.c.l.b16 %v454
    %v487 = vunpack.c.l.b16 %v455
    %v488 = vunpack.c.l.b16 %v456
    %v489 = vpack.c.b16 %v474, %v473
    %v490 = vpack.c.b16 %v476, %v475
    %v491 = vpack.c.b16 %v478, %v477
    %v492 = vpack.c.b16 %v480, %v479
    %v493 = vpack.c.b16 %v482, %v481
    %v494 = vpack.c.b16 %v484, %v483
    %v495 = vpack.c.b16 %v486, %v485
    %v496 = vpack.c.b16 %v488, %v487
    %505 = vmatpush.bf16.msra.mxu0 %v496
    %506 = vmatpush.bf16.msra.mxu0 %v495
    %507 = vmatpush.bf16.msra.mxu0 %v494
    %508 = vmatpush.bf16.msra.mxu0 %v493
    %509 = vmatpush.bf16.msra.mxu0 %v492
    %510 = vmatpush.bf16.msra.mxu0 %v491
    %511 = vmatpush.bf16.msra.mxu0 %v490
    %512 = vmatpush.bf16.msra.mxu0 %v489
    %513 = vmatmul.bf16.gmra.mxu0 %v440
    %v514 = vpop.f32.mrf.mxu0
    %v515 = vadd.f32 0.0, %v514
    %v516 = vpop.f32.mrf.mxu0
    %v517 = vadd.f32 0.0, %v516
    %518 = vdwg.mxu0
    %v519 = vadd.f32 %v326, %v515
    %v520 = vadd.f32 %v327, %v517
    %v521 = vld [vmem:[%s12] sm:$0x1]
    %v523 = vperm.slane %v521, 0
    %v525 = vadd.f32 %v519, %v523
    %v526 = vadd.f32 %v520, %v523
    %527 = vst.msk [vmem:[#allocation7] sm:$0xff] %vm76, %v525
    %528 = vst.msk [vmem:[#allocation7 + $0x8] sm:$0xff] %vm76, %v526
    %v529 = vld [vmem:[%s13] sm:$0x1]
    %v531 = vperm.slane %v529, 0
    %v533 = vmul.f32 %v525, %v531
    %vm534 = vcmask 261127
    %v535 = vsel %vm534, %v533, 0.0
    %536 = vadd.xlane.f32.xlu0 %v535
    %v537 = vpop.xlane.xlu0 %536
    %s538 = sld [smem:[#allocation4]]
    %s539 = sld [smem:[#allocation2]]
    %s540 = smul.f32 %s538, %s539
    %v541 = vstv %s540
    %v542 = vadd.f32 %v537, %v541
    %s543 = sld [smem:[#allocation3]]
    %v544 = vstv %s543
    %v545 = vadd.f32 %v542, %v544
    %vm546 = vcmask 7175
    %547 = vst.msk [vmem:[%s17 - $0x7] sm:$0x80] %vm546, %v545
    %v548 = vld [vmem:[%s13] sm:$0x1]
    %v550 = vperm.slane %v548, 0
    %v552 = vmul.f32 %v526, %v550
    %v553 = vsel %vm534, %v552, 0.0
    %554 = vadd.xlane.f32.xlu0 %v553
    %v555 = vpop.xlane.xlu0 %554
    %s556 = sld [smem:[#allocation4 + $0x1]]
    %s557 = sld [smem:[#allocation2]]
    %s558 = smul.f32 %s556, %s557
    %v559 = vstv %s558
    %v560 = vadd.f32 %v555, %v559
    %s561 = sld [smem:[#allocation3]]
    %v562 = vstv %s561
    %v563 = vadd.f32 %v560, %v562
    %564 = vst.msk [vmem:[%s17 - $0x6] sm:$0x80] %vm546, %v563
    // Predicated region
    $region70: #{nvd_forward.1} parent=1 // pred_check
      _
    $region71: #{nvd_forward.1} parent=1 // pred_check_branch
      %566 = sbr.rel (0) target = $region73
    $region72: #{nvd_forward.1} parent=1 // pred_region
      %568 = vsyncadd [#allocation5], 0
      %s569 = sshll.u32 [#allocation7], 4
      %s570 = int_to_ptr.vmem [resolvable:$true] %s569
      %s571 = sshll.u32 %s16, 4
      %s572 = int_to_ptr.hbm [resolvable:$true] %s571
      %577 = dma.vmem_to_hbm [thread:$0]  %s570, 256, %s572, [#allocation5], 128, 128, 8
    $region73: #{nvd_forward.1} parent=1 // pred_fallthru
      _
    // Predicated region
    $region74: #{nvd_forward.1} parent=1 // pred_check
      _
    $region75: #{nvd_forward.1} parent=1 // pred_check_branch
      %579 = sbr.rel (0) target = $region77
    $region76: #{nvd_forward.1} parent=1 // pred_region
      _
    $region77: #{nvd_forward.1} parent=1 // pred_fallthru
      _
    // Predicated region
    $region78: #{nvd_forward.1} parent=1 // pred_check
      _
    $region79: #{nvd_forward.1} parent=1 // pred_check_branch
      %581 = sbr.rel (0) target = $region81
    $region80: #{nvd_forward.1} parent=1 // pred_region
      %583 = dma.done [#allocation5], 256
    $region81: #{nvd_forward.1} parent=1 // pred_fallthru
      _
    // Predicated region
    $region82: #{nvd_forward.1} parent=1 // pred_check
      _
    $region83: #{nvd_forward.1} parent=1 // pred_check_branch
      %585 = sbr.rel (0) target = $region85
    $region84: #{nvd_forward.1} parent=1 // pred_region
      _
    $region85: #{nvd_forward.1} parent=1 // pred_fallthru
      _
    %586 = vsyncpa [#allocation5], 1
    %587 = vsyncpa [#allocation6], 1

</llo_original>
